<compile_context>
chip_gen: v6e
topology: v6e:2x2x1
jax: 0.10.0
libtpu: 0.0.40
codegen_flags: <defaults>
</compile_context>

<pallas_src>
import functools

import jax
import jax.numpy as jnp
from jax.experimental import pallas as pl
from jax.experimental.pallas import tpu as pltpu

BN_EPS = 1e-5
N_BLOCKS = 3          # ResidualBlock count (2 Linear+BN sub-layers each)
_LANE = 128
_SUBLANE = 8
_INV_SQRT2 = 0.7071067811865476


def _gelu_exact(h):
    # PyTorch nn.GELU() default ('none') = exact erf formulation.
    return 0.5 * h * (1.0 + jax.lax.erf(h * _INV_SQRT2))


# ----------------------------------------------------------------------------
# Kernel: one batch tile of the full forward pass. Weights are VMEM-resident
# (constant index_map), activations streamed per grid step.
# ----------------------------------------------------------------------------
def mlp_residual_kernel(
    x_ref,        # (TB, Din_p)
    w_in_ref,     # (Din_p, H_p)      BN-folded
    b_in_ref,     # (1, H_p)          BN-folded
    w_blk_ref,    # (2*N_BLOCKS, H_p, H_p)  BN-folded
    b_blk_ref,    # (2*N_BLOCKS, 1, H_p)    BN-folded
    w_out_ref,    # (H_p, Dout_p)
    b_out_ref,    # (1, Dout_p)
    o_ref,        # (TB, Dout_p)
):
    # --- input_layer: (Linear∘BN folded) -> GELU -> Dropout(id) ---
    h = jnp.dot(x_ref[...], w_in_ref[...], preferred_element_type=jnp.float32)
    h = _gelu_exact(h + b_in_ref[...])

    # --- residual blocks (statically unrolled) ---
    for blk in range(N_BLOCKS):
        identity = h
        for lin in range(2):
            idx = blk * 2 + lin
            h = jnp.dot(h, w_blk_ref[idx], preferred_element_type=jnp.float32)
            h = _gelu_exact(h + b_blk_ref[idx])
        h = h + identity

    # --- output_layer: Linear ---
    out = jnp.dot(h, w_out_ref[...], preferred_element_type=jnp.float32) + b_out_ref[...]
    o_ref[...] = out.astype(o_ref.dtype)


# ----------------------------------------------------------------------------
# Host-side helpers: BN folding + lane/sublane padding + pallas_call wrapper.
# ----------------------------------------------------------------------------
def _round_up(n, m):
    return ((n + m - 1) // m) * m


def _pad2(a, rows, cols):
    return jnp.pad(a, ((0, rows - a.shape[0]), (0, cols - a.shape[1])))


def _fold_bn(w, b, bn):
    """Fold eval-mode BatchNorm1d (after a Linear) into the Linear weights.

    bn rows: [gamma, beta, running_mean, running_var].
    y = ((xW + b) - mean) * gamma * rsqrt(var+eps) + beta
      = x (W*s) + ((b - mean)*s + beta),  s = gamma * rsqrt(var+eps)
    """
    gamma, beta, rmean, rvar = bn[0], bn[1], bn[2], bn[3]
    s = gamma * jax.lax.rsqrt(rvar + BN_EPS)
    return w * s[None, :], (b - rmean[None, :]) * s[None, :] + beta[None, :]


@functools.partial(jax.jit, static_argnames=("batch_tile",))
def mlp_regressor_residual(x, params, batch_tile=None):
    B, d_in = x.shape
    H = params["w_in"].shape[1]
    d_out = params["w_out"].shape[1]

    # --- fold eval-mode BatchNorm into the preceding Linear (exact affine). ---
    w_in, b_in = _fold_bn(params["w_in"], params["b_in"], params["bn_in"])
    w_blk_l, b_blk_l = [], []
    for i in range(2 * N_BLOCKS):
        w, b = _fold_bn(params["w_blk"][i], params["b_blk"][i], params["bn_blk"][i])
        w_blk_l.append(w)
        b_blk_l.append(b)
    w_blk = jnp.stack(w_blk_l, 0)
    b_blk = jnp.stack(b_blk_l, 0)
    w_out, b_out = params["w_out"], params["b_out"]

    # --- pad feature dims to lane multiples; batch to a row-tile multiple. ---
    d_in_p = _round_up(d_in, _LANE)
    h_p = _round_up(H, _LANE)
    d_out_p = _round_up(d_out, _LANE)
    if batch_tile is None:
        batch_tile = 256 if B >= 256 else _round_up(B, _SUBLANE)
    b_p = _round_up(B, batch_tile)

    x_p = jnp.pad(x.astype(jnp.float32), ((0, b_p - B), (0, d_in_p - d_in)))
    w_in_p = _pad2(w_in, d_in_p, h_p)
    b_in_p = _pad2(b_in, 1, h_p)
    w_blk_p = jnp.pad(w_blk, ((0, 0), (0, h_p - H), (0, h_p - H)))
    b_blk_p = jnp.pad(b_blk, ((0, 0), (0, 0), (0, h_p - H)))
    w_out_p = _pad2(w_out, h_p, d_out_p)
    b_out_p = _pad2(b_out, 1, d_out_p)

    grid = (b_p // batch_tile,)

    def _const(ndim):
        return lambda i: (0,) * ndim

    out_p = pl.pallas_call(
        mlp_residual_kernel,
        out_shape=jax.ShapeDtypeStruct((b_p, d_out_p), jnp.float32),
        grid=grid,
        in_specs=[
            pl.BlockSpec((batch_tile, d_in_p), lambda i: (i, 0)),        # x tile
            pl.BlockSpec((d_in_p, h_p), _const(2)),                      # resident weights
            pl.BlockSpec((1, h_p), _const(2)),
            pl.BlockSpec((2 * N_BLOCKS, h_p, h_p), _const(3)),
            pl.BlockSpec((2 * N_BLOCKS, 1, h_p), _const(3)),
            pl.BlockSpec((h_p, d_out_p), _const(2)),
            pl.BlockSpec((1, d_out_p), _const(2)),
        ],
        out_specs=pl.BlockSpec((batch_tile, d_out_p), lambda i: (i, 0)),
        compiler_params=pltpu.CompilerParams(
            dimension_semantics=("parallel",),
        ),
    )(x_p, w_in_p, b_in_p, w_blk_p, b_blk_p, w_out_p, b_out_p)

    return out_p[:B, :d_out]


# ----------------------------------------------------------------------------
# Deterministic parameter init (PyTorch-Linear-style) with NON-trivial
# BatchNorm running stats so the BN-folding path is actually exercised.
# ----------------------------------------------------------------------------
def init_params(key, input_dim, hidden_dim, output_dim):
    keys = jax.random.split(key, 16)

    def linear(k, fan_in, fan_out):
        bound = 1.0 / float(fan_in) ** 0.5
        kw, kb = jax.random.split(k)
        w = jax.random.uniform(kw, (fan_in, fan_out), jnp.float32, -bound, bound)
        b = jax.random.uniform(kb, (1, fan_out), jnp.float32, -bound, bound)
        return w, b

    def bn_stats(k, dim):
        k1, k2, k3, k4 = jax.random.split(k, 4)
        gamma = jax.random.uniform(k1, (dim,), jnp.float32, 0.5, 1.5)
        beta = 0.1 * jax.random.normal(k2, (dim,), jnp.float32)
        rmean = 0.1 * jax.random.normal(k3, (dim,), jnp.float32)
        rvar = jax.random.uniform(k4, (dim,), jnp.float32, 0.5, 1.5)
        return jnp.stack([gamma, beta, rmean, rvar], 0)   # (4, dim)

    w_in, b_in = linear(keys[0], input_dim, hidden_dim)
    bn_in = bn_stats(keys[1], hidden_dim)

    w_blk_l, b_blk_l, bn_blk_l = [], [], []
    for i in range(2 * N_BLOCKS):
        w, b = linear(keys[2 + 2 * i], hidden_dim, hidden_dim)
        w_blk_l.append(w)
        b_blk_l.append(b)
        bn_blk_l.append(bn_stats(keys[3 + 2 * i], hidden_dim))
    w_blk = jnp.stack(w_blk_l, 0)       # (6, H, H)
    b_blk = jnp.stack(b_blk_l, 0)       # (6, 1, H)
    bn_blk = jnp.stack(bn_blk_l, 0)     # (6, 4, H)

    w_out, b_out = linear(keys[14], hidden_dim, output_dim)

    return dict(w_in=w_in, b_in=b_in, bn_in=bn_in,
                w_blk=w_blk, b_blk=b_blk, bn_blk=bn_blk,
                w_out=w_out, b_out=b_out)


def reference_forward(x, p):
    """Plain-JAX reference mirroring the PyTorch eval-mode forward (unfolded BN)."""
    def bn(h, q):
        return (h - q[2]) / jnp.sqrt(q[3] + BN_EPS) * q[0] + q[1]

    def gelu(h):
        return 0.5 * h * (1.0 + jax.lax.erf(h / jnp.sqrt(2.0)))

    h = gelu(bn(x @ p["w_in"] + p["b_in"], p["bn_in"]))
    for blk in range(N_BLOCKS):
        ident = h
        for lin in range(2):
            i = blk * 2 + lin
            h = gelu(bn(h @ p["w_blk"][i] + p["b_blk"][i], p["bn_blk"][i]))
        h = h + ident
    return h @ p["w_out"] + p["b_out"]


if __name__ == "__main__":
    B, D_IN, HIDDEN, D_OUT = 8, 16, 128, 8

    key = jax.random.PRNGKey(0)
    k_x, k_p = jax.random.split(key)
    x = jax.random.normal(k_x, (B, D_IN), dtype=jnp.float32)
    params = init_params(k_p, D_IN, HIDDEN, D_OUT)

    out = jax.block_until_ready(mlp_regressor_residual(x, params))
    ref = reference_forward(x, params)

    assert out.shape == (B, D_OUT)
    max_err = float(jnp.max(jnp.abs(out - ref)))
    assert jnp.allclose(out, ref, atol=1e-3, rtol=1e-3), (
        f"mismatch vs reference (max abs err {max_err})")

    print("KERNEL_OK")
</pallas_src>

<mosaic_0001>
module attributes {stable_mosaic.version = 11 : i64} {
  func.func @mlp_residual_kernel(%arg0: i32, %arg1: memref<8x128xf32, #tpu.memory_space<vmem>>, %arg2: memref<128x128xf32, #tpu.memory_space<vmem>>, %arg3: memref<1x128xf32, #tpu.memory_space<vmem>>, %arg4: memref<6x128x128xf32, #tpu.memory_space<vmem>>, %arg5: memref<6x1x128xf32, #tpu.memory_space<vmem>>, %arg6: memref<128x128xf32, #tpu.memory_space<vmem>>, %arg7: memref<1x128xf32, #tpu.memory_space<vmem>>, %arg8: memref<8x128xf32, #tpu.memory_space<vmem>>) attributes {dimension_semantics = [#tpu.dimension_semantics<parallel>], iteration_bounds = array<i64: 1>, scalar_prefetch = 0 : i64, scratch_operands = 0 : i64, tpu.core_type = #tpu.core_type<tc>, window_params = [{transform_indices = @transform_0, window_bounds = array<i64: 8, 128>}, {pipeline_mode = #tpu.pipeline_mode<synchronous>, transform_indices = @transform_1, window_bounds = array<i64: 128, 128>}, {pipeline_mode = #tpu.pipeline_mode<synchronous>, transform_indices = @transform_2, window_bounds = array<i64: 1, 128>}, {pipeline_mode = #tpu.pipeline_mode<synchronous>, transform_indices = @transform_3, window_bounds = array<i64: 6, 128, 128>}, {pipeline_mode = #tpu.pipeline_mode<synchronous>, transform_indices = @transform_4, window_bounds = array<i64: 6, 1, 128>}, {pipeline_mode = #tpu.pipeline_mode<synchronous>, transform_indices = @transform_5, window_bounds = array<i64: 128, 128>}, {pipeline_mode = #tpu.pipeline_mode<synchronous>, transform_indices = @transform_6, window_bounds = array<i64: 1, 128>}, {transform_indices = @transform_7, window_bounds = array<i64: 8, 128>}]} {
    %c0 = arith.constant 0 : index
    %c0_0 = arith.constant 0 : index
    %0 = vector.load %arg1[%c0, %c0_0] : memref<8x128xf32, #tpu.memory_space<vmem>>, vector<8x128xf32>
    %c0_1 = arith.constant 0 : index
    %c0_2 = arith.constant 0 : index
    %1 = vector.load %arg2[%c0_1, %c0_2] : memref<128x128xf32, #tpu.memory_space<vmem>>, vector<128x128xf32>
    %cst = arith.constant dense<0.000000e+00> : vector<8x128xf32>
    %2 = tpu.matmul %0, %1, %cst {dimension_numbers = #tpu.dot_dimension_numbers<[1], [0], [0], [1], [0, 0, 1, 1], [], []>} : vector<8x128xf32>, vector<128x128xf32>, vector<8x128xf32> -> vector<8x128xf32>
    %c0_3 = arith.constant 0 : index
    %c0_4 = arith.constant 0 : index
    %3 = vector.load %arg3[%c0_3, %c0_4] : memref<1x128xf32, #tpu.memory_space<vmem>>, vector<1x128xf32>
    %4 = vector.broadcast %3 : vector<1x128xf32> to vector<8x128xf32>
    %5 = arith.addf %2, %4 : vector<8x128xf32>
    %cst_5 = arith.constant 5.000000e-01 : f32
    %6 = vector.broadcast %cst_5 : f32 to vector<8x128xf32>
    %7 = arith.mulf %6, %5 : vector<8x128xf32>
    %cst_6 = arith.constant 0.707106769 : f32
    %8 = vector.broadcast %cst_6 : f32 to vector<8x128xf32>
    %9 = arith.mulf %5, %8 : vector<8x128xf32>
    %10 = math.erf %9 : vector<8x128xf32>
    %cst_7 = arith.constant 1.000000e+00 : f32
    %11 = vector.broadcast %cst_7 : f32 to vector<8x128xf32>
    %12 = arith.addf %11, %10 : vector<8x128xf32>
    %13 = arith.mulf %7, %12 : vector<8x128xf32>
    %c0_8 = arith.constant 0 : index
    %c0_9 = arith.constant 0 : index
    %c0_10 = arith.constant 0 : index
    %14 = vector.load %arg4[%c0_8, %c0_9, %c0_10] : memref<6x128x128xf32, #tpu.memory_space<vmem>>, vector<1x128x128xf32>
    %15 = vector.shape_cast %14 : vector<1x128x128xf32> to vector<128x128xf32>
    %cst_11 = arith.constant dense<0.000000e+00> : vector<8x128xf32>
    %16 = tpu.matmul %13, %15, %cst_11 {dimension_numbers = #tpu.dot_dimension_numbers<[1], [0], [0], [1], [0, 0, 1, 1], [], []>} : vector<8x128xf32>, vector<128x128xf32>, vector<8x128xf32> -> vector<8x128xf32>
    %c0_12 = arith.constant 0 : index
    %c0_13 = arith.constant 0 : index
    %c0_14 = arith.constant 0 : index
    %17 = vector.load %arg5[%c0_12, %c0_13, %c0_14] : memref<6x1x128xf32, #tpu.memory_space<vmem>>, vector<1x1x128xf32>
    %18 = vector.shape_cast %17 : vector<1x1x128xf32> to vector<1x128xf32>
    %19 = vector.broadcast %18 : vector<1x128xf32> to vector<8x128xf32>
    %20 = arith.addf %16, %19 : vector<8x128xf32>
    %cst_15 = arith.constant 5.000000e-01 : f32
    %21 = vector.broadcast %cst_15 : f32 to vector<8x128xf32>
    %22 = arith.mulf %21, %20 : vector<8x128xf32>
    %cst_16 = arith.constant 0.707106769 : f32
    %23 = vector.broadcast %cst_16 : f32 to vector<8x128xf32>
    %24 = arith.mulf %20, %23 : vector<8x128xf32>
    %25 = math.erf %24 : vector<8x128xf32>
    %cst_17 = arith.constant 1.000000e+00 : f32
    %26 = vector.broadcast %cst_17 : f32 to vector<8x128xf32>
    %27 = arith.addf %26, %25 : vector<8x128xf32>
    %28 = arith.mulf %22, %27 : vector<8x128xf32>
    %c1 = arith.constant 1 : index
    %c0_18 = arith.constant 0 : index
    %c0_19 = arith.constant 0 : index
    %29 = vector.load %arg4[%c1, %c0_18, %c0_19] : memref<6x128x128xf32, #tpu.memory_space<vmem>>, vector<1x128x128xf32>
    %30 = vector.shape_cast %29 : vector<1x128x128xf32> to vector<128x128xf32>
    %cst_20 = arith.constant dense<0.000000e+00> : vector<8x128xf32>
    %31 = tpu.matmul %28, %30, %cst_20 {dimension_numbers = #tpu.dot_dimension_numbers<[1], [0], [0], [1], [0, 0, 1, 1], [], []>} : vector<8x128xf32>, vector<128x128xf32>, vector<8x128xf32> -> vector<8x128xf32>
    %c1_21 = arith.constant 1 : index
    %c0_22 = arith.constant 0 : index
    %c0_23 = arith.constant 0 : index
    %32 = vector.load %arg5[%c1_21, %c0_22, %c0_23] : memref<6x1x128xf32, #tpu.memory_space<vmem>>, vector<1x1x128xf32>
    %33 = vector.shape_cast %32 : vector<1x1x128xf32> to vector<1x128xf32>
    %34 = vector.broadcast %33 : vector<1x128xf32> to vector<8x128xf32>
    %35 = arith.addf %31, %34 : vector<8x128xf32>
    %cst_24 = arith.constant 5.000000e-01 : f32
    %36 = vector.broadcast %cst_24 : f32 to vector<8x128xf32>
    %37 = arith.mulf %36, %35 : vector<8x128xf32>
    %cst_25 = arith.constant 0.707106769 : f32
    %38 = vector.broadcast %cst_25 : f32 to vector<8x128xf32>
    %39 = arith.mulf %35, %38 : vector<8x128xf32>
    %40 = math.erf %39 : vector<8x128xf32>
    %cst_26 = arith.constant 1.000000e+00 : f32
    %41 = vector.broadcast %cst_26 : f32 to vector<8x128xf32>
    %42 = arith.addf %41, %40 : vector<8x128xf32>
    %43 = arith.mulf %37, %42 : vector<8x128xf32>
    %44 = arith.addf %43, %13 : vector<8x128xf32>
    %c2 = arith.constant 2 : index
    %c0_27 = arith.constant 0 : index
    %c0_28 = arith.constant 0 : index
    %45 = vector.load %arg4[%c2, %c0_27, %c0_28] : memref<6x128x128xf32, #tpu.memory_space<vmem>>, vector<1x128x128xf32>
    %46 = vector.shape_cast %45 : vector<1x128x128xf32> to vector<128x128xf32>
    %cst_29 = arith.constant dense<0.000000e+00> : vector<8x128xf32>
    %47 = tpu.matmul %44, %46, %cst_29 {dimension_numbers = #tpu.dot_dimension_numbers<[1], [0], [0], [1], [0, 0, 1, 1], [], []>} : vector<8x128xf32>, vector<128x128xf32>, vector<8x128xf32> -> vector<8x128xf32>
    %c2_30 = arith.constant 2 : index
    %c0_31 = arith.constant 0 : index
    %c0_32 = arith.constant 0 : index
    %48 = vector.load %arg5[%c2_30, %c0_31, %c0_32] : memref<6x1x128xf32, #tpu.memory_space<vmem>>, vector<1x1x128xf32>
    %49 = vector.shape_cast %48 : vector<1x1x128xf32> to vector<1x128xf32>
    %50 = vector.broadcast %49 : vector<1x128xf32> to vector<8x128xf32>
    %51 = arith.addf %47, %50 : vector<8x128xf32>
    %cst_33 = arith.constant 5.000000e-01 : f32
    %52 = vector.broadcast %cst_33 : f32 to vector<8x128xf32>
    %53 = arith.mulf %52, %51 : vector<8x128xf32>
    %cst_34 = arith.constant 0.707106769 : f32
    %54 = vector.broadcast %cst_34 : f32 to vector<8x128xf32>
    %55 = arith.mulf %51, %54 : vector<8x128xf32>
    %56 = math.erf %55 : vector<8x128xf32>
    %cst_35 = arith.constant 1.000000e+00 : f32
    %57 = vector.broadcast %cst_35 : f32 to vector<8x128xf32>
    %58 = arith.addf %57, %56 : vector<8x128xf32>
    %59 = arith.mulf %53, %58 : vector<8x128xf32>
    %c3 = arith.constant 3 : index
    %c0_36 = arith.constant 0 : index
    %c0_37 = arith.constant 0 : index
    %60 = vector.load %arg4[%c3, %c0_36, %c0_37] : memref<6x128x128xf32, #tpu.memory_space<vmem>>, vector<1x128x128xf32>
    %61 = vector.shape_cast %60 : vector<1x128x128xf32> to vector<128x128xf32>
    %cst_38 = arith.constant dense<0.000000e+00> : vector<8x128xf32>
    %62 = tpu.matmul %59, %61, %cst_38 {dimension_numbers = #tpu.dot_dimension_numbers<[1], [0], [0], [1], [0, 0, 1, 1], [], []>} : vector<8x128xf32>, vector<128x128xf32>, vector<8x128xf32> -> vector<8x128xf32>
    %c3_39 = arith.constant 3 : index
    %c0_40 = arith.constant 0 : index
    %c0_41 = arith.constant 0 : index
    %63 = vector.load %arg5[%c3_39, %c0_40, %c0_41] : memref<6x1x128xf32, #tpu.memory_space<vmem>>, vector<1x1x128xf32>
    %64 = vector.shape_cast %63 : vector<1x1x128xf32> to vector<1x128xf32>
    %65 = vector.broadcast %64 : vector<1x128xf32> to vector<8x128xf32>
    %66 = arith.addf %62, %65 : vector<8x128xf32>
    %cst_42 = arith.constant 5.000000e-01 : f32
    %67 = vector.broadcast %cst_42 : f32 to vector<8x128xf32>
    %68 = arith.mulf %67, %66 : vector<8x128xf32>
    %cst_43 = arith.constant 0.707106769 : f32
    %69 = vector.broadcast %cst_43 : f32 to vector<8x128xf32>
    %70 = arith.mulf %66, %69 : vector<8x128xf32>
    %71 = math.erf %70 : vector<8x128xf32>
    %cst_44 = arith.constant 1.000000e+00 : f32
    %72 = vector.broadcast %cst_44 : f32 to vector<8x128xf32>
    %73 = arith.addf %72, %71 : vector<8x128xf32>
    %74 = arith.mulf %68, %73 : vector<8x128xf32>
    %75 = arith.addf %74, %44 : vector<8x128xf32>
    %c4 = arith.constant 4 : index
    %c0_45 = arith.constant 0 : index
    %c0_46 = arith.constant 0 : index
    %76 = vector.load %arg4[%c4, %c0_45, %c0_46] : memref<6x128x128xf32, #tpu.memory_space<vmem>>, vector<1x128x128xf32>
    %77 = vector.shape_cast %76 : vector<1x128x128xf32> to vector<128x128xf32>
    %cst_47 = arith.constant dense<0.000000e+00> : vector<8x128xf32>
    %78 = tpu.matmul %75, %77, %cst_47 {dimension_numbers = #tpu.dot_dimension_numbers<[1], [0], [0], [1], [0, 0, 1, 1], [], []>} : vector<8x128xf32>, vector<128x128xf32>, vector<8x128xf32> -> vector<8x128xf32>
    %c4_48 = arith.constant 4 : index
    %c0_49 = arith.constant 0 : index
    %c0_50 = arith.constant 0 : index
    %79 = vector.load %arg5[%c4_48, %c0_49, %c0_50] : memref<6x1x128xf32, #tpu.memory_space<vmem>>, vector<1x1x128xf32>
    %80 = vector.shape_cast %79 : vector<1x1x128xf32> to vector<1x128xf32>
    %81 = vector.broadcast %80 : vector<1x128xf32> to vector<8x128xf32>
    %82 = arith.addf %78, %81 : vector<8x128xf32>
    %cst_51 = arith.constant 5.000000e-01 : f32
    %83 = vector.broadcast %cst_51 : f32 to vector<8x128xf32>
    %84 = arith.mulf %83, %82 : vector<8x128xf32>
    %cst_52 = arith.constant 0.707106769 : f32
    %85 = vector.broadcast %cst_52 : f32 to vector<8x128xf32>
    %86 = arith.mulf %82, %85 : vector<8x128xf32>
    %87 = math.erf %86 : vector<8x128xf32>
    %cst_53 = arith.constant 1.000000e+00 : f32
    %88 = vector.broadcast %cst_53 : f32 to vector<8x128xf32>
    %89 = arith.addf %88, %87 : vector<8x128xf32>
    %90 = arith.mulf %84, %89 : vector<8x128xf32>
    %c5 = arith.constant 5 : index
    %c0_54 = arith.constant 0 : index
    %c0_55 = arith.constant 0 : index
    %91 = vector.load %arg4[%c5, %c0_54, %c0_55] : memref<6x128x128xf32, #tpu.memory_space<vmem>>, vector<1x128x128xf32>
    %92 = vector.shape_cast %91 : vector<1x128x128xf32> to vector<128x128xf32>
    %cst_56 = arith.constant dense<0.000000e+00> : vector<8x128xf32>
    %93 = tpu.matmul %90, %92, %cst_56 {dimension_numbers = #tpu.dot_dimension_numbers<[1], [0], [0], [1], [0, 0, 1, 1], [], []>} : vector<8x128xf32>, vector<128x128xf32>, vector<8x128xf32> -> vector<8x128xf32>
    %c5_57 = arith.constant 5 : index
    %c0_58 = arith.constant 0 : index
    %c0_59 = arith.constant 0 : index
    %94 = vector.load %arg5[%c5_57, %c0_58, %c0_59] : memref<6x1x128xf32, #tpu.memory_space<vmem>>, vector<1x1x128xf32>
    %95 = vector.shape_cast %94 : vector<1x1x128xf32> to vector<1x128xf32>
    %96 = vector.broadcast %95 : vector<1x128xf32> to vector<8x128xf32>
    %97 = arith.addf %93, %96 : vector<8x128xf32>
    %cst_60 = arith.constant 5.000000e-01 : f32
    %98 = vector.broadcast %cst_60 : f32 to vector<8x128xf32>
    %99 = arith.mulf %98, %97 : vector<8x128xf32>
    %cst_61 = arith.constant 0.707106769 : f32
    %100 = vector.broadcast %cst_61 : f32 to vector<8x128xf32>
    %101 = arith.mulf %97, %100 : vector<8x128xf32>
    %102 = math.erf %101 : vector<8x128xf32>
    %cst_62 = arith.constant 1.000000e+00 : f32
    %103 = vector.broadcast %cst_62 : f32 to vector<8x128xf32>
    %104 = arith.addf %103, %102 : vector<8x128xf32>
    %105 = arith.mulf %99, %104 : vector<8x128xf32>
    %106 = arith.addf %105, %75 : vector<8x128xf32>
    %c0_63 = arith.constant 0 : index
    %c0_64 = arith.constant 0 : index
    %107 = vector.load %arg6[%c0_63, %c0_64] : memref<128x128xf32, #tpu.memory_space<vmem>>, vector<128x128xf32>
    %cst_65 = arith.constant dense<0.000000e+00> : vector<8x128xf32>
    %108 = tpu.matmul %106, %107, %cst_65 {dimension_numbers = #tpu.dot_dimension_numbers<[1], [0], [0], [1], [0, 0, 1, 1], [], []>} : vector<8x128xf32>, vector<128x128xf32>, vector<8x128xf32> -> vector<8x128xf32>
    %c0_66 = arith.constant 0 : index
    %c0_67 = arith.constant 0 : index
    %109 = vector.load %arg7[%c0_66, %c0_67] : memref<1x128xf32, #tpu.memory_space<vmem>>, vector<1x128xf32>
    %110 = vector.broadcast %109 : vector<1x128xf32> to vector<8x128xf32>
    %111 = arith.addf %108, %110 : vector<8x128xf32>
    %c0_68 = arith.constant 0 : index
    %c0_69 = arith.constant 0 : index
    %112 = vector.load %arg8[%c0_68, %c0_69] : memref<8x128xf32, #tpu.memory_space<vmem>>, vector<8x128xf32>
    tpu.vector_store %arg8[%c0_68, %c0_69], %111 {strides = array<i32>} : memref<8x128xf32, #tpu.memory_space<vmem>>, vector<8x128xf32>,
    return
  }
  func.func @transform_0(%arg0: i32) -> (i32, i32) {
    %c0_i32 = arith.constant 0 : i32
    %c0_i32_0 = arith.constant 0 : i32
    return %arg0, %c0_i32 : i32, i32
  }
  func.func @transform_1(%arg0: i32) -> (i32, i32) {
    %c0_i32 = arith.constant 0 : i32
    %c0_i32_0 = arith.constant 0 : i32
    %c0_i32_1 = arith.constant 0 : i32
    return %c0_i32, %c0_i32_0 : i32, i32
  }
  func.func @transform_2(%arg0: i32) -> (i32, i32) {
    %c0_i32 = arith.constant 0 : i32
    %c0_i32_0 = arith.constant 0 : i32
    %c0_i32_1 = arith.constant 0 : i32
    return %c0_i32, %c0_i32_0 : i32, i32
  }
  func.func @transform_3(%arg0: i32) -> (i32, i32, i32) {
    %c0_i32 = arith.constant 0 : i32
    %c0_i32_0 = arith.constant 0 : i32
    %c0_i32_1 = arith.constant 0 : i32
    %c0_i32_2 = arith.constant 0 : i32
    return %c0_i32, %c0_i32_0, %c0_i32_1 : i32, i32, i32
  }
  func.func @transform_4(%arg0: i32) -> (i32, i32, i32) {
    %c0_i32 = arith.constant 0 : i32
    %c0_i32_0 = arith.constant 0 : i32
    %c0_i32_1 = arith.constant 0 : i32
    %c0_i32_2 = arith.constant 0 : i32
    return %c0_i32, %c0_i32_0, %c0_i32_1 : i32, i32, i32
  }
  func.func @transform_5(%arg0: i32) -> (i32, i32) {
    %c0_i32 = arith.constant 0 : i32
    %c0_i32_0 = arith.constant 0 : i32
    %c0_i32_1 = arith.constant 0 : i32
    return %c0_i32, %c0_i32_0 : i32, i32
  }
  func.func @transform_6(%arg0: i32) -> (i32, i32) {
    %c0_i32 = arith.constant 0 : i32
    %c0_i32_0 = arith.constant 0 : i32
    %c0_i32_1 = arith.constant 0 : i32
    return %c0_i32, %c0_i32_0 : i32, i32
  }
  func.func @transform_7(%arg0: i32) -> (i32, i32) {
    %c0_i32 = arith.constant 0 : i32
    %c0_i32_0 = arith.constant 0 : i32
    return %arg0, %c0_i32 : i32, i32
  }
}

</mosaic_0001>

<llo_original>
// kernel: mlp_regressor_residual.1
$region0: #{mlp_regressor_residual.1}
  #allocation0 [shape = 'u32[]', space=smem, size = 0x4, offset = 0x4, fixed_abs, tag = 'smem constant byte address 0x4 - core index']
  #allocation1 [shape = 'u32[144,128]{1,0:T(1,128)}', space=vmem, size = 0x12000, scoped, tag = 'internal scratch']
  %s0 = inlined_call_operand.vmem [shape: f32[8,128], index: 0, kind: input, shape index: {}]
  %s1 = inlined_call_operand.vmem [shape: f32[128,128], index: 1, kind: input, shape index: {}]
  %s2 = inlined_call_operand.vmem [shape: f32[1,128], index: 2, kind: input, shape index: {}]
  %s3 = inlined_call_operand.vmem [shape: f32[6,128,128], index: 3, kind: input, shape index: {}]
  %s4 = inlined_call_operand.vmem [shape: f32[6,1,128], index: 4, kind: input, shape index: {}]
  %s5 = inlined_call_operand.vmem [shape: f32[128,128], index: 5, kind: input, shape index: {}]
  %s6 = inlined_call_operand.vmem [shape: f32[1,128], index: 6, kind: input, shape index: {}]
  %s7 = inlined_call_operand.hbm [shape: f32[8,128], index: 7, kind: output, shape index: {}]
  %s8 = sld [smem:[#allocation0]]
  $region38: #{mlp_regressor_residual.1} parent=0
    _
  %s10 = ssub.s32 1, %s8
  %s11 = scalar_select 0, %s10, %s8
  $region1: #{mlp_regressor_residual.1} parent=0
    #allocation2 [shape = 'u8[4096]{0}', space=vmem, size = 0x1000, scoped, tag = 'output window, operand 0, single buffered']
    #allocation3 [shape = 's32[1]{0}', space=sflag, size = 0x4, scoped, tag = 'scoped memory for mlp_regressor_residual.1']
    %12 = vsyncpa [#allocation3], 0
    // Predicated region
    $region2: #{mlp_regressor_residual.1} parent=1 // pred_check
      _
    $region3: #{mlp_regressor_residual.1} parent=1 // pred_check_branch
      %14 = sbr.rel (0) target = $region5
    $region4: #{mlp_regressor_residual.1} parent=1 // pred_region
      _
    $region5: #{mlp_regressor_residual.1} parent=1 // pred_fallthru
      _
    // Predicated region
    $region6: #{mlp_regressor_residual.1} parent=1 // pred_check
      _
    $region7: #{mlp_regressor_residual.1} parent=1 // pred_check_branch
      %16 = sbr.rel (0) target = $region9
    $region8: #{mlp_regressor_residual.1} parent=1 // pred_region
      _
    $region9: #{mlp_regressor_residual.1} parent=1 // pred_fallthru
      _
    // Predicated region
    $region10: #{mlp_regressor_residual.1} parent=1 // pred_check
      _
    $region11: #{mlp_regressor_residual.1} parent=1 // pred_check_branch
      %18 = sbr.rel (0) target = $region13
    $region12: #{mlp_regressor_residual.1} parent=1 // pred_region
      _
    $region13: #{mlp_regressor_residual.1} parent=1 // pred_fallthru
      _
    // Predicated region
    $region14: #{mlp_regressor_residual.1} parent=1 // pred_check
      _
    $region15: #{mlp_regressor_residual.1} parent=1 // pred_check_branch
      %20 = sbr.rel (0) target = $region17
    $region16: #{mlp_regressor_residual.1} parent=1 // pred_region
      _
    $region17: #{mlp_regressor_residual.1} parent=1 // pred_fallthru
      _
    // Predicated region
    $region18: #{mlp_regressor_residual.1} parent=1 // pred_check
      _
    $region19: #{mlp_regressor_residual.1} parent=1 // pred_check_branch
      %22 = sbr.rel (0) target = $region21
    $region20: #{mlp_regressor_residual.1} parent=1 // pred_region
      _
    $region21: #{mlp_regressor_residual.1} parent=1 // pred_fallthru
      _
    // Predicated region
    $region22: #{mlp_regressor_residual.1} parent=1 // pred_check
      _
    $region23: #{mlp_regressor_residual.1} parent=1 // pred_check_branch
      %24 = sbr.rel (0) target = $region25
    $region24: #{mlp_regressor_residual.1} parent=1 // pred_region
      _
    $region25: #{mlp_regressor_residual.1} parent=1 // pred_fallthru
      _
    // Predicated region
    $region26: #{mlp_regressor_residual.1} parent=1 // pred_check
      _
    $region27: #{mlp_regressor_residual.1} parent=1 // pred_check_branch
      %26 = sbr.rel (0) target = $region29
    $region28: #{mlp_regressor_residual.1} parent=1 // pred_region
      _
    $region29: #{mlp_regressor_residual.1} parent=1 // pred_fallthru
      _
    %v27 = vld [vmem:[%s0] sm:$0xff]
    %v28 = vld [vmem:[%s1] sm:$0xff]
    %v29 = vld [vmem:[%s1 + $0x8] sm:$0xff]
    %v30 = vld [vmem:[%s1 + $0x10] sm:$0xff]
    %v31 = vld [vmem:[%s1 + $0x18] sm:$0xff]
    %v32 = vld [vmem:[%s1 + $0x20] sm:$0xff]
    %v33 = vld [vmem:[%s1 + $0x28] sm:$0xff]
    %v34 = vld [vmem:[%s1 + $0x30] sm:$0xff]
    %v35 = vld [vmem:[%s1 + $0x38] sm:$0xff]
    %v36 = vld [vmem:[%s1 + $0x40] sm:$0xff]
    %v37 = vld [vmem:[%s1 + $0x48] sm:$0xff]
    %v38 = vld [vmem:[%s1 + $0x50] sm:$0xff]
    %v39 = vld [vmem:[%s1 + $0x58] sm:$0xff]
    %v40 = vld [vmem:[%s1 + $0x60] sm:$0xff]
    %v41 = vld [vmem:[%s1 + $0x68] sm:$0xff]
    %v42 = vld [vmem:[%s1 + $0x70] sm:$0xff]
    %v43 = vld [vmem:[%s1 + $0x78] sm:$0xff]
    %v44 = vld [vmem:[%s2] sm:$0x1]
    %v46 = vlaneseq
    %v47 = vshrl.u32 %v46, 7
    %v48 = vsub.s32 0, %v47
    %v49 = vrot.slane %v44, %v48
    %51 = vmatprep.subr.mxu0 0.0
    %52 = vmatpush1.msra.mxu0 %v43
    %53 = vmatprep.subr.mxu0 0.0
    %54 = vmatpush1.msra.mxu0 %v42
    %55 = vmatprep.subr.mxu0 0.0
    %56 = vmatpush1.msra.mxu0 %v41
    %57 = vmatprep.subr.mxu0 0.0
    %58 = vmatpush1.msra.mxu0 %v40
    %59 = vmatprep.subr.mxu0 0.0
    %60 = vmatpush1.msra.mxu0 %v39
    %61 = vmatprep.subr.mxu0 0.0
    %62 = vmatpush1.msra.mxu0 %v38
    %63 = vmatprep.subr.mxu0 0.0
    %64 = vmatpush1.msra.mxu0 %v37
    %65 = vmatprep.subr.mxu0 0.0
    %66 = vmatpush1.msra.mxu0 %v36
    %67 = vmatprep.subr.mxu0 0.0
    %68 = vmatpush1.msra.mxu0 %v35
    %69 = vmatprep.subr.mxu0 0.0
    %70 = vmatpush1.msra.mxu0 %v34
    %71 = vmatprep.subr.mxu0 0.0
    %72 = vmatpush1.msra.mxu0 %v33
    %73 = vmatprep.subr.mxu0 0.0
    %74 = vmatpush1.msra.mxu0 %v32
    %75 = vmatprep.subr.mxu0 0.0
    %76 = vmatpush1.msra.mxu0 %v31
    %77 = vmatprep.subr.mxu0 0.0
    %78 = vmatpush1.msra.mxu0 %v30
    %79 = vmatprep.subr.mxu0 0.0
    %80 = vmatpush1.msra.mxu0 %v29
    %81 = vmatprep.subr.mxu0 0.0
    %82 = vmatpush1.msra.mxu0 %v28
    %83 = vmatprep.subr.mxu0 0.0
    %84 = vmatpush2.msra.mxu0 0.0
    %85 = vmatprep.subr.mxu0 0.0
    %86 = vmatpush2.msra.mxu0 0.0
    %87 = vmatprep.subr.mxu0 0.0
    %88 = vmatpush2.msra.mxu0 0.0
    %89 = vmatprep.subr.mxu0 0.0
    %90 = vmatpush2.msra.mxu0 0.0
    %91 = vmatprep.subr.mxu0 0.0
    %92 = vmatpush2.msra.mxu0 0.0
    %93 = vmatprep.subr.mxu0 0.0
    %94 = vmatpush2.msra.mxu0 0.0
    %95 = vmatprep.subr.mxu0 0.0
    %96 = vmatpush2.msra.mxu0 0.0
    %97 = vmatprep.subr.mxu0 0.0
    %98 = vmatpush2.msra.mxu0 0.0
    %99 = vmatprep.subr.mxu0 0.0
    %100 = vmatpush2.msra.mxu0 0.0
    %101 = vmatprep.subr.mxu0 0.0
    %102 = vmatpush2.msra.mxu0 0.0
    %103 = vmatprep.subr.mxu0 0.0
    %104 = vmatpush2.msra.mxu0 0.0
    %105 = vmatprep.subr.mxu0 0.0
    %106 = vmatpush2.msra.mxu0 0.0
    %107 = vmatprep.subr.mxu0 0.0
    %108 = vmatpush2.msra.mxu0 0.0
    %109 = vmatprep.subr.mxu0 0.0
    %110 = vmatpush2.msra.mxu0 0.0
    %111 = vmatprep.subr.mxu0 0.0
    %112 = vmatpush2.msra.mxu0 0.0
    %113 = vmatprep.subr.mxu0 0.0
    %114 = vmatpush2.msra.mxu0 0.0
    %115 = vmatprep.mubr.f32.mxu0 0.0
    %116 = vmatmul.mubr.f32.gmra.mxu0 %v27
    %v117 = vpop.f32.mrf.mxu0
    %v118 = vadd.f32 %v49, %v117
    %v119 = vpop.f32.mrf.mxu0
    %120 = vdwg.mxu0
    %v121 = vmul.f32 %v118, 0.5
    %v122 = vmul.f32 %v118, 0.70710677
    %v123 = verf.f32.pop %v122
    %v124 = vadd.f32 %v123, 1.0
    %v125 = vmul.f32 %v121, %v124
    %v126 = vld [vmem:[%s3] sm:$0xff]
    %v127 = vld [vmem:[%s3 + $0x8] sm:$0xff]
    %v128 = vld [vmem:[%s3 + $0x10] sm:$0xff]
    %v129 = vld [vmem:[%s3 + $0x18] sm:$0xff]
    %v130 = vld [vmem:[%s3 + $0x20] sm:$0xff]
    %v131 = vld [vmem:[%s3 + $0x28] sm:$0xff]
    %v132 = vld [vmem:[%s3 + $0x30] sm:$0xff]
    %v133 = vld [vmem:[%s3 + $0x38] sm:$0xff]
    %v134 = vld [vmem:[%s3 + $0x40] sm:$0xff]
    %v135 = vld [vmem:[%s3 + $0x48] sm:$0xff]
    %v136 = vld [vmem:[%s3 + $0x50] sm:$0xff]
    %v137 = vld [vmem:[%s3 + $0x58] sm:$0xff]
    %v138 = vld [vmem:[%s3 + $0x60] sm:$0xff]
    %v139 = vld [vmem:[%s3 + $0x68] sm:$0xff]
    %v140 = vld [vmem:[%s3 + $0x70] sm:$0xff]
    %v141 = vld [vmem:[%s3 + $0x78] sm:$0xff]
    %v142 = vld [vmem:[%s4] sm:$0x1]
    %v144 = vlaneseq
    %v145 = vshrl.u32 %v144, 7
    %v146 = vsub.s32 0, %v145
    %v147 = vrot.slane %v142, %v146
    %149 = vmatprep.subr.mxu0 0.0
    %150 = vmatpush1.msra.mxu0 %v141
    %151 = vmatprep.subr.mxu0 0.0
    %152 = vmatpush1.msra.mxu0 %v140
    %153 = vmatprep.subr.mxu0 0.0
    %154 = vmatpush1.msra.mxu0 %v139
    %155 = vmatprep.subr.mxu0 0.0
    %156 = vmatpush1.msra.mxu0 %v138
    %157 = vmatprep.subr.mxu0 0.0
    %158 = vmatpush1.msra.mxu0 %v137
    %159 = vmatprep.subr.mxu0 0.0
    %160 = vmatpush1.msra.mxu0 %v136
    %161 = vmatprep.subr.mxu0 0.0
    %162 = vmatpush1.msra.mxu0 %v135
    %163 = vmatprep.subr.mxu0 0.0
    %164 = vmatpush1.msra.mxu0 %v134
    %165 = vmatprep.subr.mxu0 0.0
    %166 = vmatpush1.msra.mxu0 %v133
    %167 = vmatprep.subr.mxu0 0.0
    %168 = vmatpush1.msra.mxu0 %v132
    %169 = vmatprep.subr.mxu0 0.0
    %170 = vmatpush1.msra.mxu0 %v131
    %171 = vmatprep.subr.mxu0 0.0
    %172 = vmatpush1.msra.mxu0 %v130
    %173 = vmatprep.subr.mxu0 0.0
    %174 = vmatpush1.msra.mxu0 %v129
    %175 = vmatprep.subr.mxu0 0.0
    %176 = vmatpush1.msra.mxu0 %v128
    %177 = vmatprep.subr.mxu0 0.0
    %178 = vmatpush1.msra.mxu0 %v127
    %179 = vmatprep.subr.mxu0 0.0
    %180 = vmatpush1.msra.mxu0 %v126
    %181 = vmatprep.subr.mxu0 0.0
    %182 = vmatpush2.msra.mxu0 0.0
    %183 = vmatprep.subr.mxu0 0.0
    %184 = vmatpush2.msra.mxu0 0.0
    %185 = vmatprep.subr.mxu0 0.0
    %186 = vmatpush2.msra.mxu0 0.0
    %187 = vmatprep.subr.mxu0 0.0
    %188 = vmatpush2.msra.mxu0 0.0
    %189 = vmatprep.subr.mxu0 0.0
    %190 = vmatpush2.msra.mxu0 0.0
    %191 = vmatprep.subr.mxu0 0.0
    %192 = vmatpush2.msra.mxu0 0.0
    %193 = vmatprep.subr.mxu0 0.0
    %194 = vmatpush2.msra.mxu0 0.0
    %195 = vmatprep.subr.mxu0 0.0
    %196 = vmatpush2.msra.mxu0 0.0
    %197 = vmatprep.subr.mxu0 0.0
    %198 = vmatpush2.msra.mxu0 0.0
    %199 = vmatprep.subr.mxu0 0.0
    %200 = vmatpush2.msra.mxu0 0.0
    %201 = vmatprep.subr.mxu0 0.0
    %202 = vmatpush2.msra.mxu0 0.0
    %203 = vmatprep.subr.mxu0 0.0
    %204 = vmatpush2.msra.mxu0 0.0
    %205 = vmatprep.subr.mxu0 0.0
    %206 = vmatpush2.msra.mxu0 0.0
    %207 = vmatprep.subr.mxu0 0.0
    %208 = vmatpush2.msra.mxu0 0.0
    %209 = vmatprep.subr.mxu0 0.0
    %210 = vmatpush2.msra.mxu0 0.0
    %211 = vmatprep.subr.mxu0 0.0
    %212 = vmatpush2.msra.mxu0 0.0
    %213 = vmatprep.mubr.f32.mxu0 0.0
    %214 = vmatmul.mubr.f32.gmra.mxu0 %v125
    %v215 = vpop.f32.mrf.mxu0
    %v216 = vadd.f32 %v147, %v215
    %v217 = vpop.f32.mrf.mxu0
    %218 = vdwg.mxu0
    %v219 = vmul.f32 %v216, 0.5
    %v220 = vmul.f32 %v216, 0.70710677
    %v221 = verf.f32.pop %v220
    %v222 = vadd.f32 %v221, 1.0
    %v223 = vmul.f32 %v219, %v222
    %s224 = scalar_lea.vmem %s3, 128
    %v225 = vld [vmem:[%s224] sm:$0xff]
    %v226 = vld [vmem:[%s224 + $0x8] sm:$0xff]
    %v227 = vld [vmem:[%s224 + $0x10] sm:$0xff]
    %v228 = vld [vmem:[%s224 + $0x18] sm:$0xff]
    %v229 = vld [vmem:[%s224 + $0x20] sm:$0xff]
    %v230 = vld [vmem:[%s224 + $0x28] sm:$0xff]
    %v231 = vld [vmem:[%s224 + $0x30] sm:$0xff]
    %v232 = vld [vmem:[%s224 + $0x38] sm:$0xff]
    %v233 = vld [vmem:[%s224 + $0x40] sm:$0xff]
    %v234 = vld [vmem:[%s224 + $0x48] sm:$0xff]
    %v235 = vld [vmem:[%s224 + $0x50] sm:$0xff]
    %v236 = vld [vmem:[%s224 + $0x58] sm:$0xff]
    %v237 = vld [vmem:[%s224 + $0x60] sm:$0xff]
    %v238 = vld [vmem:[%s224 + $0x68] sm:$0xff]
    %v239 = vld [vmem:[%s224 + $0x70] sm:$0xff]
    %v240 = vld [vmem:[%s224 + $0x78] sm:$0xff]
    %s241 = scalar_lea.vmem %s4, 1
    %v242 = vld [vmem:[%s241] sm:$0x1]
    %v244 = vlaneseq
    %v245 = vshrl.u32 %v244, 7
    %v246 = vsub.s32 0, %v245
    %v247 = vrot.slane %v242, %v246
    %249 = vmatprep.subr.mxu0 0.0
    %250 = vmatpush1.msra.mxu0 %v240
    %251 = vmatprep.subr.mxu0 0.0
    %252 = vmatpush1.msra.mxu0 %v239
    %253 = vmatprep.subr.mxu0 0.0
    %254 = vmatpush1.msra.mxu0 %v238
    %255 = vmatprep.subr.mxu0 0.0
    %256 = vmatpush1.msra.mxu0 %v237
    %257 = vmatprep.subr.mxu0 0.0
    %258 = vmatpush1.msra.mxu0 %v236
    %259 = vmatprep.subr.mxu0 0.0
    %260 = vmatpush1.msra.mxu0 %v235
    %261 = vmatprep.subr.mxu0 0.0
    %262 = vmatpush1.msra.mxu0 %v234
    %263 = vmatprep.subr.mxu0 0.0
    %264 = vmatpush1.msra.mxu0 %v233
    %265 = vmatprep.subr.mxu0 0.0
    %266 = vmatpush1.msra.mxu0 %v232
    %267 = vmatprep.subr.mxu0 0.0
    %268 = vmatpush1.msra.mxu0 %v231
    %269 = vmatprep.subr.mxu0 0.0
    %270 = vmatpush1.msra.mxu0 %v230
    %271 = vmatprep.subr.mxu0 0.0
    %272 = vmatpush1.msra.mxu0 %v229
    %273 = vmatprep.subr.mxu0 0.0
    %274 = vmatpush1.msra.mxu0 %v228
    %275 = vmatprep.subr.mxu0 0.0
    %276 = vmatpush1.msra.mxu0 %v227
    %277 = vmatprep.subr.mxu0 0.0
    %278 = vmatpush1.msra.mxu0 %v226
    %279 = vmatprep.subr.mxu0 0.0
    %280 = vmatpush1.msra.mxu0 %v225
    %281 = vmatprep.subr.mxu0 0.0
    %282 = vmatpush2.msra.mxu0 0.0
    %283 = vmatprep.subr.mxu0 0.0
    %284 = vmatpush2.msra.mxu0 0.0
    %285 = vmatprep.subr.mxu0 0.0
    %286 = vmatpush2.msra.mxu0 0.0
    %287 = vmatprep.subr.mxu0 0.0
    %288 = vmatpush2.msra.mxu0 0.0
    %289 = vmatprep.subr.mxu0 0.0
    %290 = vmatpush2.msra.mxu0 0.0
    %291 = vmatprep.subr.mxu0 0.0
    %292 = vmatpush2.msra.mxu0 0.0
    %293 = vmatprep.subr.mxu0 0.0
    %294 = vmatpush2.msra.mxu0 0.0
    %295 = vmatprep.subr.mxu0 0.0
    %296 = vmatpush2.msra.mxu0 0.0
    %297 = vmatprep.subr.mxu0 0.0
    %298 = vmatpush2.msra.mxu0 0.0
    %299 = vmatprep.subr.mxu0 0.0
    %300 = vmatpush2.msra.mxu0 0.0
    %301 = vmatprep.subr.mxu0 0.0
    %302 = vmatpush2.msra.mxu0 0.0
    %303 = vmatprep.subr.mxu0 0.0
    %304 = vmatpush2.msra.mxu0 0.0
    %305 = vmatprep.subr.mxu0 0.0
    %306 = vmatpush2.msra.mxu0 0.0
    %307 = vmatprep.subr.mxu0 0.0
    %308 = vmatpush2.msra.mxu0 0.0
    %309 = vmatprep.subr.mxu0 0.0
    %310 = vmatpush2.msra.mxu0 0.0
    %311 = vmatprep.subr.mxu0 0.0
    %312 = vmatpush2.msra.mxu0 0.0
    %313 = vmatprep.mubr.f32.mxu0 0.0
    %314 = vmatmul.mubr.f32.gmra.mxu0 %v223
    %v315 = vpop.f32.mrf.mxu0
    %v316 = vadd.f32 %v247, %v315
    %v317 = vpop.f32.mrf.mxu0
    %318 = vdwg.mxu0
    %v319 = vmul.f32 %v316, 0.5
    %v320 = vmul.f32 %v316, 0.70710677
    %v321 = verf.f32.pop %v320
    %v322 = vadd.f32 %v321, 1.0
    %v323 = vmul.f32 %v319, %v322
    %v324 = vadd.f32 %v323, %v125
    %s325 = scalar_lea.vmem %s3, 256
    %v326 = vld [vmem:[%s325] sm:$0xff]
    %v327 = vld [vmem:[%s325 + $0x8] sm:$0xff]
    %v328 = vld [vmem:[%s325 + $0x10] sm:$0xff]
    %v329 = vld [vmem:[%s325 + $0x18] sm:$0xff]
    %v330 = vld [vmem:[%s325 + $0x20] sm:$0xff]
    %v331 = vld [vmem:[%s325 + $0x28] sm:$0xff]
    %v332 = vld [vmem:[%s325 + $0x30] sm:$0xff]
    %v333 = vld [vmem:[%s325 + $0x38] sm:$0xff]
    %v334 = vld [vmem:[%s325 + $0x40] sm:$0xff]
    %v335 = vld [vmem:[%s325 + $0x48] sm:$0xff]
    %v336 = vld [vmem:[%s325 + $0x50] sm:$0xff]
    %v337 = vld [vmem:[%s325 + $0x58] sm:$0xff]
    %v338 = vld [vmem:[%s325 + $0x60] sm:$0xff]
    %v339 = vld [vmem:[%s325 + $0x68] sm:$0xff]
    %v340 = vld [vmem:[%s325 + $0x70] sm:$0xff]
    %v341 = vld [vmem:[%s325 + $0x78] sm:$0xff]
    %s342 = scalar_lea.vmem %s4, 2
    %v343 = vld [vmem:[%s342] sm:$0x1]
    %v345 = vlaneseq
    %v346 = vshrl.u32 %v345, 7
    %v347 = vsub.s32 0, %v346
    %v348 = vrot.slane %v343, %v347
    %350 = vmatprep.subr.mxu0 0.0
    %351 = vmatpush1.msra.mxu0 %v341
    %352 = vmatprep.subr.mxu0 0.0
    %353 = vmatpush1.msra.mxu0 %v340
    %354 = vmatprep.subr.mxu0 0.0
    %355 = vmatpush1.msra.mxu0 %v339
    %356 = vmatprep.subr.mxu0 0.0
    %357 = vmatpush1.msra.mxu0 %v338
    %358 = vmatprep.subr.mxu0 0.0
    %359 = vmatpush1.msra.mxu0 %v337
    %360 = vmatprep.subr.mxu0 0.0
    %361 = vmatpush1.msra.mxu0 %v336
    %362 = vmatprep.subr.mxu0 0.0
    %363 = vmatpush1.msra.mxu0 %v335
    %364 = vmatprep.subr.mxu0 0.0
    %365 = vmatpush1.msra.mxu0 %v334
    %366 = vmatprep.subr.mxu0 0.0
    %367 = vmatpush1.msra.mxu0 %v333
    %368 = vmatprep.subr.mxu0 0.0
    %369 = vmatpush1.msra.mxu0 %v332
    %370 = vmatprep.subr.mxu0 0.0
    %371 = vmatpush1.msra.mxu0 %v331
    %372 = vmatprep.subr.mxu0 0.0
    %373 = vmatpush1.msra.mxu0 %v330
    %374 = vmatprep.subr.mxu0 0.0
    %375 = vmatpush1.msra.mxu0 %v329
    %376 = vmatprep.subr.mxu0 0.0
    %377 = vmatpush1.msra.mxu0 %v328
    %378 = vmatprep.subr.mxu0 0.0
    %379 = vmatpush1.msra.mxu0 %v327
    %380 = vmatprep.subr.mxu0 0.0
    %381 = vmatpush1.msra.mxu0 %v326
    %382 = vmatprep.subr.mxu0 0.0
    %383 = vmatpush2.msra.mxu0 0.0
    %384 = vmatprep.subr.mxu0 0.0
    %385 = vmatpush2.msra.mxu0 0.0
    %386 = vmatprep.subr.mxu0 0.0
    %387 = vmatpush2.msra.mxu0 0.0
    %388 = vmatprep.subr.mxu0 0.0
    %389 = vmatpush2.msra.mxu0 0.0
    %390 = vmatprep.subr.mxu0 0.0
    %391 = vmatpush2.msra.mxu0 0.0
    %392 = vmatprep.subr.mxu0 0.0
    %393 = vmatpush2.msra.mxu0 0.0
    %394 = vmatprep.subr.mxu0 0.0
    %395 = vmatpush2.msra.mxu0 0.0
    %396 = vmatprep.subr.mxu0 0.0
    %397 = vmatpush2.msra.mxu0 0.0
    %398 = vmatprep.subr.mxu0 0.0
    %399 = vmatpush2.msra.mxu0 0.0
    %400 = vmatprep.subr.mxu0 0.0
    %401 = vmatpush2.msra.mxu0 0.0
    %402 = vmatprep.subr.mxu0 0.0
    %403 = vmatpush2.msra.mxu0 0.0
    %404 = vmatprep.subr.mxu0 0.0
    %405 = vmatpush2.msra.mxu0 0.0
    %406 = vmatprep.subr.mxu0 0.0
    %407 = vmatpush2.msra.mxu0 0.0
    %408 = vmatprep.subr.mxu0 0.0
    %409 = vmatpush2.msra.mxu0 0.0
    %410 = vmatprep.subr.mxu0 0.0
    %411 = vmatpush2.msra.mxu0 0.0
    %412 = vmatprep.subr.mxu0 0.0
    %413 = vmatpush2.msra.mxu0 0.0
    %414 = vmatprep.mubr.f32.mxu0 0.0
    %415 = vmatmul.mubr.f32.gmra.mxu0 %v324
    %v416 = vpop.f32.mrf.mxu0
    %v417 = vadd.f32 %v348, %v416
    %v418 = vpop.f32.mrf.mxu0
    %419 = vdwg.mxu0
    %v420 = vmul.f32 %v417, 0.5
    %v421 = vmul.f32 %v417, 0.70710677
    %v422 = verf.f32.pop %v421
    %v423 = vadd.f32 %v422, 1.0
    %v424 = vmul.f32 %v420, %v423
    %s425 = scalar_lea.vmem %s3, 384
    %v426 = vld [vmem:[%s425] sm:$0xff]
    %v427 = vld [vmem:[%s425 + $0x8] sm:$0xff]
    %v428 = vld [vmem:[%s425 + $0x10] sm:$0xff]
    %v429 = vld [vmem:[%s425 + $0x18] sm:$0xff]
    %v430 = vld [vmem:[%s425 + $0x20] sm:$0xff]
    %v431 = vld [vmem:[%s425 + $0x28] sm:$0xff]
    %v432 = vld [vmem:[%s425 + $0x30] sm:$0xff]
    %v433 = vld [vmem:[%s425 + $0x38] sm:$0xff]
    %v434 = vld [vmem:[%s425 + $0x40] sm:$0xff]
    %v435 = vld [vmem:[%s425 + $0x48] sm:$0xff]
    %v436 = vld [vmem:[%s425 + $0x50] sm:$0xff]
    %v437 = vld [vmem:[%s425 + $0x58] sm:$0xff]
    %v438 = vld [vmem:[%s425 + $0x60] sm:$0xff]
    %v439 = vld [vmem:[%s425 + $0x68] sm:$0xff]
    %v440 = vld [vmem:[%s425 + $0x70] sm:$0xff]
    %v441 = vld [vmem:[%s425 + $0x78] sm:$0xff]
    %s442 = scalar_lea.vmem %s4, 3
    %v443 = vld [vmem:[%s442] sm:$0x1]
    %v445 = vlaneseq
    %v446 = vshrl.u32 %v445, 7
    %v447 = vsub.s32 0, %v446
    %v448 = vrot.slane %v443, %v447
    %450 = vmatprep.subr.mxu0 0.0
    %451 = vmatpush1.msra.mxu0 %v441
    %452 = vmatprep.subr.mxu0 0.0
    %453 = vmatpush1.msra.mxu0 %v440
    %454 = vmatprep.subr.mxu0 0.0
    %455 = vmatpush1.msra.mxu0 %v439
    %456 = vmatprep.subr.mxu0 0.0
    %457 = vmatpush1.msra.mxu0 %v438
    %458 = vmatprep.subr.mxu0 0.0
    %459 = vmatpush1.msra.mxu0 %v437
    %460 = vmatprep.subr.mxu0 0.0
    %461 = vmatpush1.msra.mxu0 %v436
    %462 = vmatprep.subr.mxu0 0.0
    %463 = vmatpush1.msra.mxu0 %v435
    %464 = vmatprep.subr.mxu0 0.0
    %465 = vmatpush1.msra.mxu0 %v434
    %466 = vmatprep.subr.mxu0 0.0
    %467 = vmatpush1.msra.mxu0 %v433
    %468 = vmatprep.subr.mxu0 0.0
    %469 = vmatpush1.msra.mxu0 %v432
    %470 = vmatprep.subr.mxu0 0.0
    %471 = vmatpush1.msra.mxu0 %v431
    %472 = vmatprep.subr.mxu0 0.0
    %473 = vmatpush1.msra.mxu0 %v430
    %474 = vmatprep.subr.mxu0 0.0
    %475 = vmatpush1.msra.mxu0 %v429
    %476 = vmatprep.subr.mxu0 0.0
    %477 = vmatpush1.msra.mxu0 %v428
    %478 = vmatprep.subr.mxu0 0.0
    %479 = vmatpush1.msra.mxu0 %v427
    %480 = vmatprep.subr.mxu0 0.0
    %481 = vmatpush1.msra.mxu0 %v426
    %482 = vmatprep.subr.mxu0 0.0
    %483 = vmatpush2.msra.mxu0 0.0
    %484 = vmatprep.subr.mxu0 0.0
    %485 = vmatpush2.msra.mxu0 0.0
    %486 = vmatprep.subr.mxu0 0.0
    %487 = vmatpush2.msra.mxu0 0.0
    %488 = vmatprep.subr.mxu0 0.0
    %489 = vmatpush2.msra.mxu0 0.0
    %490 = vmatprep.subr.mxu0 0.0
    %491 = vmatpush2.msra.mxu0 0.0
    %492 = vmatprep.subr.mxu0 0.0
    %493 = vmatpush2.msra.mxu0 0.0
    %494 = vmatprep.subr.mxu0 0.0
    %495 = vmatpush2.msra.mxu0 0.0
    %496 = vmatprep.subr.mxu0 0.0
    %497 = vmatpush2.msra.mxu0 0.0
    %498 = vmatprep.subr.mxu0 0.0
    %499 = vmatpush2.msra.mxu0 0.0
    %500 = vmatprep.subr.mxu0 0.0
    %501 = vmatpush2.msra.mxu0 0.0
    %502 = vmatprep.subr.mxu0 0.0
    %503 = vmatpush2.msra.mxu0 0.0
    %504 = vmatprep.subr.mxu0 0.0
    %505 = vmatpush2.msra.mxu0 0.0
    %506 = vmatprep.subr.mxu0 0.0
    %507 = vmatpush2.msra.mxu0 0.0
    %508 = vmatprep.subr.mxu0 0.0
    %509 = vmatpush2.msra.mxu0 0.0
    %510 = vmatprep.subr.mxu0 0.0
    %511 = vmatpush2.msra.mxu0 0.0
    %512 = vmatprep.subr.mxu0 0.0
    %513 = vmatpush2.msra.mxu0 0.0
    %514 = vmatprep.mubr.f32.mxu0 0.0
    %515 = vmatmul.mubr.f32.gmra.mxu0 %v424
    %v516 = vpop.f32.mrf.mxu0
    %v517 = vadd.f32 %v448, %v516
    %v518 = vpop.f32.mrf.mxu0
    %519 = vdwg.mxu0
    %v520 = vmul.f32 %v517, 0.5
    %v521 = vmul.f32 %v517, 0.70710677
    %v522 = verf.f32.pop %v521
    %v523 = vadd.f32 %v522, 1.0
    %v524 = vmul.f32 %v520, %v523
    %v525 = vadd.f32 %v524, %v324
    %s526 = scalar_lea.vmem %s3, 512
    %v527 = vld [vmem:[%s526] sm:$0xff]
    %v528 = vld [vmem:[%s526 + $0x8] sm:$0xff]
    %v529 = vld [vmem:[%s526 + $0x10] sm:$0xff]
    %v530 = vld [vmem:[%s526 + $0x18] sm:$0xff]
    %v531 = vld [vmem:[%s526 + $0x20] sm:$0xff]
    %v532 = vld [vmem:[%s526 + $0x28] sm:$0xff]
    %v533 = vld [vmem:[%s526 + $0x30] sm:$0xff]
    %v534 = vld [vmem:[%s526 + $0x38] sm:$0xff]
    %v535 = vld [vmem:[%s526 + $0x40] sm:$0xff]
    %v536 = vld [vmem:[%s526 + $0x48] sm:$0xff]
    %v537 = vld [vmem:[%s526 + $0x50] sm:$0xff]
    %v538 = vld [vmem:[%s526 + $0x58] sm:$0xff]
    %v539 = vld [vmem:[%s526 + $0x60] sm:$0xff]
    %v540 = vld [vmem:[%s526 + $0x68] sm:$0xff]
    %v541 = vld [vmem:[%s526 + $0x70] sm:$0xff]
    %v542 = vld [vmem:[%s526 + $0x78] sm:$0xff]
    %s543 = scalar_lea.vmem %s4, 4
    %v544 = vld [vmem:[%s543] sm:$0x1]
    %v546 = vlaneseq
    %v547 = vshrl.u32 %v546, 7
    %v548 = vsub.s32 0, %v547
    %v549 = vrot.slane %v544, %v548
    %551 = vmatprep.subr.mxu0 0.0
    %552 = vmatpush1.msra.mxu0 %v542
    %553 = vmatprep.subr.mxu0 0.0
    %554 = vmatpush1.msra.mxu0 %v541
    %555 = vmatprep.subr.mxu0 0.0
    %556 = vmatpush1.msra.mxu0 %v540
    %557 = vmatprep.subr.mxu0 0.0
    %558 = vmatpush1.msra.mxu0 %v539
    %559 = vmatprep.subr.mxu0 0.0
    %560 = vmatpush1.msra.mxu0 %v538
    %561 = vmatprep.subr.mxu0 0.0
    %562 = vmatpush1.msra.mxu0 %v537
    %563 = vmatprep.subr.mxu0 0.0
    %564 = vmatpush1.msra.mxu0 %v536
    %565 = vmatprep.subr.mxu0 0.0
    %566 = vmatpush1.msra.mxu0 %v535
    %567 = vmatprep.subr.mxu0 0.0
    %568 = vmatpush1.msra.mxu0 %v534
    %569 = vmatprep.subr.mxu0 0.0
    %570 = vmatpush1.msra.mxu0 %v533
    %571 = vmatprep.subr.mxu0 0.0
    %572 = vmatpush1.msra.mxu0 %v532
    %573 = vmatprep.subr.mxu0 0.0
    %574 = vmatpush1.msra.mxu0 %v531
    %575 = vmatprep.subr.mxu0 0.0
    %576 = vmatpush1.msra.mxu0 %v530
    %577 = vmatprep.subr.mxu0 0.0
    %578 = vmatpush1.msra.mxu0 %v529
    %579 = vmatprep.subr.mxu0 0.0
    %580 = vmatpush1.msra.mxu0 %v528
    %581 = vmatprep.subr.mxu0 0.0
    %582 = vmatpush1.msra.mxu0 %v527
    %583 = vmatprep.subr.mxu0 0.0
    %584 = vmatpush2.msra.mxu0 0.0
    %585 = vmatprep.subr.mxu0 0.0
    %586 = vmatpush2.msra.mxu0 0.0
    %587 = vmatprep.subr.mxu0 0.0
    %588 = vmatpush2.msra.mxu0 0.0
    %589 = vmatprep.subr.mxu0 0.0
    %590 = vmatpush2.msra.mxu0 0.0
    %591 = vmatprep.subr.mxu0 0.0
    %592 = vmatpush2.msra.mxu0 0.0
    %593 = vmatprep.subr.mxu0 0.0
    %594 = vmatpush2.msra.mxu0 0.0
    %595 = vmatprep.subr.mxu0 0.0
    %596 = vmatpush2.msra.mxu0 0.0
    %597 = vmatprep.subr.mxu0 0.0
    %598 = vmatpush2.msra.mxu0 0.0
    %599 = vmatprep.subr.mxu0 0.0
    %600 = vmatpush2.msra.mxu0 0.0
    %601 = vmatprep.subr.mxu0 0.0
    %602 = vmatpush2.msra.mxu0 0.0
    %603 = vmatprep.subr.mxu0 0.0
    %604 = vmatpush2.msra.mxu0 0.0
    %605 = vmatprep.subr.mxu0 0.0
    %606 = vmatpush2.msra.mxu0 0.0
    %607 = vmatprep.subr.mxu0 0.0
    %608 = vmatpush2.msra.mxu0 0.0
    %609 = vmatprep.subr.mxu0 0.0
    %610 = vmatpush2.msra.mxu0 0.0
    %611 = vmatprep.subr.mxu0 0.0
    %612 = vmatpush2.msra.mxu0 0.0
    %613 = vmatprep.subr.mxu0 0.0
    %614 = vmatpush2.msra.mxu0 0.0
    %615 = vmatprep.mubr.f32.mxu0 0.0
    %616 = vmatmul.mubr.f32.gmra.mxu0 %v525
    %v617 = vpop.f32.mrf.mxu0
    %v618 = vadd.f32 %v549, %v617
    %v619 = vpop.f32.mrf.mxu0
    %620 = vdwg.mxu0
    %v621 = vmul.f32 %v618, 0.5
    %v622 = vmul.f32 %v618, 0.70710677
    %v623 = verf.f32.pop %v622
    %v624 = vadd.f32 %v623, 1.0
    %v625 = vmul.f32 %v621, %v624
    %s626 = scalar_lea.vmem %s3, 640
    %v627 = vld [vmem:[%s626] sm:$0xff]
    %v628 = vld [vmem:[%s626 + $0x8] sm:$0xff]
    %v629 = vld [vmem:[%s626 + $0x10] sm:$0xff]
    %v630 = vld [vmem:[%s626 + $0x18] sm:$0xff]
    %v631 = vld [vmem:[%s626 + $0x20] sm:$0xff]
    %v632 = vld [vmem:[%s626 + $0x28] sm:$0xff]
    %v633 = vld [vmem:[%s626 + $0x30] sm:$0xff]
    %v634 = vld [vmem:[%s626 + $0x38] sm:$0xff]
    %v635 = vld [vmem:[%s626 + $0x40] sm:$0xff]
    %v636 = vld [vmem:[%s626 + $0x48] sm:$0xff]
    %v637 = vld [vmem:[%s626 + $0x50] sm:$0xff]
    %v638 = vld [vmem:[%s626 + $0x58] sm:$0xff]
    %v639 = vld [vmem:[%s626 + $0x60] sm:$0xff]
    %v640 = vld [vmem:[%s626 + $0x68] sm:$0xff]
    %v641 = vld [vmem:[%s626 + $0x70] sm:$0xff]
    %v642 = vld [vmem:[%s626 + $0x78] sm:$0xff]
    %s643 = scalar_lea.vmem %s4, 5
    %v644 = vld [vmem:[%s643] sm:$0x1]
    %v646 = vlaneseq
    %v647 = vshrl.u32 %v646, 7
    %v648 = vsub.s32 0, %v647
    %v649 = vrot.slane %v644, %v648
    %651 = vmatprep.subr.mxu0 0.0
    %652 = vmatpush1.msra.mxu0 %v642
    %653 = vmatprep.subr.mxu0 0.0
    %654 = vmatpush1.msra.mxu0 %v641
    %655 = vmatprep.subr.mxu0 0.0
    %656 = vmatpush1.msra.mxu0 %v640
    %657 = vmatprep.subr.mxu0 0.0
    %658 = vmatpush1.msra.mxu0 %v639
    %659 = vmatprep.subr.mxu0 0.0
    %660 = vmatpush1.msra.mxu0 %v638
    %661 = vmatprep.subr.mxu0 0.0
    %662 = vmatpush1.msra.mxu0 %v637
    %663 = vmatprep.subr.mxu0 0.0
    %664 = vmatpush1.msra.mxu0 %v636
    %665 = vmatprep.subr.mxu0 0.0
    %666 = vmatpush1.msra.mxu0 %v635
    %667 = vmatprep.subr.mxu0 0.0
    %668 = vmatpush1.msra.mxu0 %v634
    %669 = vmatprep.subr.mxu0 0.0
    %670 = vmatpush1.msra.mxu0 %v633
    %671 = vmatprep.subr.mxu0 0.0
    %672 = vmatpush1.msra.mxu0 %v632
    %673 = vmatprep.subr.mxu0 0.0
    %674 = vmatpush1.msra.mxu0 %v631
    %675 = vmatprep.subr.mxu0 0.0
    %676 = vmatpush1.msra.mxu0 %v630
    %677 = vmatprep.subr.mxu0 0.0
    %678 = vmatpush1.msra.mxu0 %v629
    %679 = vmatprep.subr.mxu0 0.0
    %680 = vmatpush1.msra.mxu0 %v628
    %681 = vmatprep.subr.mxu0 0.0
    %682 = vmatpush1.msra.mxu0 %v627
    %683 = vmatprep.subr.mxu0 0.0
    %684 = vmatpush2.msra.mxu0 0.0
    %685 = vmatprep.subr.mxu0 0.0
    %686 = vmatpush2.msra.mxu0 0.0
    %687 = vmatprep.subr.mxu0 0.0
    %688 = vmatpush2.msra.mxu0 0.0
    %689 = vmatprep.subr.mxu0 0.0
    %690 = vmatpush2.msra.mxu0 0.0
    %691 = vmatprep.subr.mxu0 0.0
    %692 = vmatpush2.msra.mxu0 0.0
    %693 = vmatprep.subr.mxu0 0.0
    %694 = vmatpush2.msra.mxu0 0.0
    %695 = vmatprep.subr.mxu0 0.0
    %696 = vmatpush2.msra.mxu0 0.0
    %697 = vmatprep.subr.mxu0 0.0
    %698 = vmatpush2.msra.mxu0 0.0
    %699 = vmatprep.subr.mxu0 0.0
    %700 = vmatpush2.msra.mxu0 0.0
    %701 = vmatprep.subr.mxu0 0.0
    %702 = vmatpush2.msra.mxu0 0.0
    %703 = vmatprep.subr.mxu0 0.0
    %704 = vmatpush2.msra.mxu0 0.0
    %705 = vmatprep.subr.mxu0 0.0
    %706 = vmatpush2.msra.mxu0 0.0
    %707 = vmatprep.subr.mxu0 0.0
    %708 = vmatpush2.msra.mxu0 0.0
    %709 = vmatprep.subr.mxu0 0.0
    %710 = vmatpush2.msra.mxu0 0.0
    %711 = vmatprep.subr.mxu0 0.0
    %712 = vmatpush2.msra.mxu0 0.0
    %713 = vmatprep.subr.mxu0 0.0
    %714 = vmatpush2.msra.mxu0 0.0
    %715 = vmatprep.mubr.f32.mxu0 0.0
    %716 = vmatmul.mubr.f32.gmra.mxu0 %v625
    %v717 = vpop.f32.mrf.mxu0
    %v718 = vadd.f32 %v649, %v717
    %v719 = vpop.f32.mrf.mxu0
    %720 = vdwg.mxu0
    %v721 = vmul.f32 %v718, 0.5
    %v722 = vmul.f32 %v718, 0.70710677
    %v723 = verf.f32.pop %v722
    %v724 = vadd.f32 %v723, 1.0
    %v725 = vmul.f32 %v721, %v724
    %v726 = vadd.f32 %v725, %v525
    %v727 = vld [vmem:[%s5] sm:$0xff]
    %v728 = vld [vmem:[%s5 + $0x8] sm:$0xff]
    %v729 = vld [vmem:[%s5 + $0x10] sm:$0xff]
    %v730 = vld [vmem:[%s5 + $0x18] sm:$0xff]
    %v731 = vld [vmem:[%s5 + $0x20] sm:$0xff]
    %v732 = vld [vmem:[%s5 + $0x28] sm:$0xff]
    %v733 = vld [vmem:[%s5 + $0x30] sm:$0xff]
    %v734 = vld [vmem:[%s5 + $0x38] sm:$0xff]
    %v735 = vld [vmem:[%s5 + $0x40] sm:$0xff]
    %v736 = vld [vmem:[%s5 + $0x48] sm:$0xff]
    %v737 = vld [vmem:[%s5 + $0x50] sm:$0xff]
    %v738 = vld [vmem:[%s5 + $0x58] sm:$0xff]
    %v739 = vld [vmem:[%s5 + $0x60] sm:$0xff]
    %v740 = vld [vmem:[%s5 + $0x68] sm:$0xff]
    %v741 = vld [vmem:[%s5 + $0x70] sm:$0xff]
    %v742 = vld [vmem:[%s5 + $0x78] sm:$0xff]
    %v743 = vld [vmem:[%s6] sm:$0x1]
    %v745 = vlaneseq
    %v746 = vshrl.u32 %v745, 7
    %v747 = vsub.s32 0, %v746
    %v748 = vrot.slane %v743, %v747
    %750 = vmatprep.subr.mxu0 0.0
    %751 = vmatpush1.msra.mxu0 %v742
    %752 = vmatprep.subr.mxu0 0.0
    %753 = vmatpush1.msra.mxu0 %v741
    %754 = vmatprep.subr.mxu0 0.0
    %755 = vmatpush1.msra.mxu0 %v740
    %756 = vmatprep.subr.mxu0 0.0
    %757 = vmatpush1.msra.mxu0 %v739
    %758 = vmatprep.subr.mxu0 0.0
    %759 = vmatpush1.msra.mxu0 %v738
    %760 = vmatprep.subr.mxu0 0.0
    %761 = vmatpush1.msra.mxu0 %v737
    %762 = vmatprep.subr.mxu0 0.0
    %763 = vmatpush1.msra.mxu0 %v736
    %764 = vmatprep.subr.mxu0 0.0
    %765 = vmatpush1.msra.mxu0 %v735
    %766 = vmatprep.subr.mxu0 0.0
    %767 = vmatpush1.msra.mxu0 %v734
    %768 = vmatprep.subr.mxu0 0.0
    %769 = vmatpush1.msra.mxu0 %v733
    %770 = vmatprep.subr.mxu0 0.0
    %771 = vmatpush1.msra.mxu0 %v732
    %772 = vmatprep.subr.mxu0 0.0
    %773 = vmatpush1.msra.mxu0 %v731
    %774 = vmatprep.subr.mxu0 0.0
    %775 = vmatpush1.msra.mxu0 %v730
    %776 = vmatprep.subr.mxu0 0.0
    %777 = vmatpush1.msra.mxu0 %v729
    %778 = vmatprep.subr.mxu0 0.0
    %779 = vmatpush1.msra.mxu0 %v728
    %780 = vmatprep.subr.mxu0 0.0
    %781 = vmatpush1.msra.mxu0 %v727
    %782 = vmatprep.subr.mxu0 0.0
    %783 = vmatpush2.msra.mxu0 0.0
    %784 = vmatprep.subr.mxu0 0.0
    %785 = vmatpush2.msra.mxu0 0.0
    %786 = vmatprep.subr.mxu0 0.0
    %787 = vmatpush2.msra.mxu0 0.0
    %788 = vmatprep.subr.mxu0 0.0
    %789 = vmatpush2.msra.mxu0 0.0
    %790 = vmatprep.subr.mxu0 0.0
    %791 = vmatpush2.msra.mxu0 0.0
    %792 = vmatprep.subr.mxu0 0.0
    %793 = vmatpush2.msra.mxu0 0.0
    %794 = vmatprep.subr.mxu0 0.0
    %795 = vmatpush2.msra.mxu0 0.0
    %796 = vmatprep.subr.mxu0 0.0
    %797 = vmatpush2.msra.mxu0 0.0
    %798 = vmatprep.subr.mxu0 0.0
    %799 = vmatpush2.msra.mxu0 0.0
    %800 = vmatprep.subr.mxu0 0.0
    %801 = vmatpush2.msra.mxu0 0.0
    %802 = vmatprep.subr.mxu0 0.0
    %803 = vmatpush2.msra.mxu0 0.0
    %804 = vmatprep.subr.mxu0 0.0
    %805 = vmatpush2.msra.mxu0 0.0
    %806 = vmatprep.subr.mxu0 0.0
    %807 = vmatpush2.msra.mxu0 0.0
    %808 = vmatprep.subr.mxu0 0.0
    %809 = vmatpush2.msra.mxu0 0.0
    %810 = vmatprep.subr.mxu0 0.0
    %811 = vmatpush2.msra.mxu0 0.0
    %812 = vmatprep.subr.mxu0 0.0
    %813 = vmatpush2.msra.mxu0 0.0
    %814 = vmatprep.mubr.f32.mxu0 0.0
    %815 = vmatmul.mubr.f32.gmra.mxu0 %v726
    %v816 = vpop.f32.mrf.mxu0
    %v817 = vadd.f32 %v748, %v816
    %v818 = vpop.f32.mrf.mxu0
    %819 = vdwg.mxu0
    %820 = vst [vmem:[#allocation2] sm:$0xff] %v817
    // Predicated region
    $region30: #{mlp_regressor_residual.1} parent=1 // pred_check
      _
    $region31: #{mlp_regressor_residual.1} parent=1 // pred_check_branch
      %822 = sbr.rel (0) target = $region33
    $region32: #{mlp_regressor_residual.1} parent=1 // pred_region
      %s824 = ssub.s32 128, 128
      %825 = vsyncadd [#allocation3], %s824
      %s827 = sshll.u32 [#allocation2], 4
      %s828 = int_to_ptr.vmem [resolvable:$true] %s827
      %830 = dma.vmem_to_hbm [thread:$0]  %s828, 128, %s7, [#allocation3]
    $region33: #{mlp_regressor_residual.1} parent=1 // pred_fallthru
      _
    // Predicated region
    $region34: #{mlp_regressor_residual.1} parent=1 // pred_check
      _
    $region35: #{mlp_regressor_residual.1} parent=1 // pred_check_branch
      %832 = sbr.rel (0) target = $region37
    $region36: #{mlp_regressor_residual.1} parent=1 // pred_region
      %833 = dma.done [#allocation3], 128
    $region37: #{mlp_regressor_residual.1} parent=1 // pred_fallthru
      _
    %834 = vsyncpa [#allocation3], 1

</llo_original>
